<compile_context>
chip_gen: v5e
topology: v5e:2x2
jax: 0.10.0
libtpu: 0.0.40
codegen_flags: <defaults>
</compile_context>

<pallas_src>
import functools

import jax
import jax.numpy as jnp
from jax import lax
from jax.experimental import pallas as pl
from jax.experimental.pallas import tpu as pltpu


def _dwconv1d_kernel(x_ref, w_ref, b_ref, o_ref, *scratch, K, stride, padding,
                     mult, l_in, l_out, l_tile, csub, use_staging, stage_dtype):
    """One grid step = (one channel tile, one batch element).

    x_ref:  (1, CTI, L_in)      input tile (channels on sublanes, L on lanes)
    w_ref:  (CT_OUT, K)         weights for this output-channel tile
    b_ref:  (CT_OUT, 1)         bias for this output-channel tile
    o_ref:  (1, CT_OUT, L_out)  output tile (lane-dense along L)
    scratch: () on the fast path (mult==1, stride==1), else a single
             (CT_OUT, L_in + 2*padding) staging buffer.
    """
    f32 = jnp.float32
    ct_out = o_ref.shape[1]
    l_pad = l_in + 2 * padding

    if use_staging:
        xpad_ref = scratch[0]
        # Stage once per step: zero-pad the edges, expand the depth multiplier
        # (output channel o reads input channel o // mult) and cast, all in
        # VMEM.  Edges are rewritten every step (cheap) so the kernel stays
        # correct when the grid is split across TensorCores.
        if padding > 0:
            zeros_edge = jnp.zeros((ct_out, padding), stage_dtype)
            xpad_ref[:, pl.ds(0, padding)] = zeros_edge
            xpad_ref[:, pl.ds(l_pad - padding, padding)] = zeros_edge
        if mult == 1:
            xpad_ref[:, pl.ds(padding, l_in)] = x_ref[0].astype(stage_dtype)
        else:
            cti = x_ref.shape[1]

            # TODO(synk): replace the per-input-row expansion with a single
            # vectorized sublane repeat + dense store once that lowers cleanly.
            def stage_row(i, carry):
                row = x_ref[0, pl.ds(i, 1), :].astype(stage_dtype)
                xpad_ref[pl.ds(i * mult, mult), pl.ds(padding, l_in)] = (
                    jnp.broadcast_to(row, (mult, l_in)))
                return carry

            lax.fori_loop(0, cti, stage_row, 0)

        def read_tap(c0, col, width, col_stride=1):
            if col_stride == 1:
                return xpad_ref[pl.ds(c0, csub), pl.ds(col, width)]
            # TODO(synk): strided lane reads lower to a slow path; restructure
            # the staging if a stride>1 depthwise conv ever becomes hot.
            return xpad_ref[pl.ds(c0, csub), pl.ds(col, width, col_stride)]

        src_pad, src_len = 0, l_pad
    else:
        # Fast path (mult == 1, stride == 1): taps come straight from the
        # input tile; padding is handled with static edge-tile clipping, so
        # there is no extra staging store/load per element.
        def read_tap(c0, col, width, col_stride=1):
            return x_ref[0, pl.ds(c0, csub), pl.ds(col, width)]

        src_pad, src_len = padding, l_in

    # ---- lane (L) sub-tile bookkeeping: all static ---------------------------
    num_t = -(-l_out // l_tile)          # total lane sub-tiles
    num_full = l_out // l_tile           # sub-tiles of full width l_tile
    if src_pad == 0:
        # Source is already padded (staged path) or padding == 0: every full
        # tile's tap reads are in range.
        t_lo, t_hi = 0, num_full
    else:                                # fast path with padding (stride == 1)
        t_lo = -(-src_pad // l_tile)
        t_max = (src_len - l_tile - (K - 1) + src_pad) // l_tile
        t_hi = max(t_lo, min(num_full, t_max + 1))
    edge_ts = [t for t in range(num_t) if t < t_lo or t >= t_hi]

    hoist_full_w = K * csub * l_tile * 4 <= 64 * 1024
    num_cs = ct_out // csub

    def cs_body(cs, carry):
        c0 = cs * csub
        if not isinstance(c0, int) and csub % 8 == 0:
            c0 = pl.multiple_of(c0, 8)
        w_cs = w_ref[pl.ds(c0, csub), :].astype(f32)      # (csub, K), loaded once
        b_cs = b_ref[pl.ds(c0, csub), :].astype(f32)      # (csub, 1)
        w_cols = [w_cs[:, kk:kk + 1] for kk in range(K)]

        # -- interior tiles: full width, every tap read in range --------------
        n_interior = t_hi - t_lo
        if n_interior > 0:
            # Hoisted out of the lane loop (JAX does not CSE broadcast_in_dim).
            bias_tile = jnp.broadcast_to(b_cs, (csub, l_tile))
            if hoist_full_w:
                w_taps = [jnp.broadcast_to(w_cols[kk], (csub, l_tile))
                          for kk in range(K)]
            else:
                w_taps = w_cols

            def t_body(t, inner_carry):
                start = t * l_tile
                if not isinstance(start, int):
                    start = pl.multiple_of(start, 128)
                acc = bias_tile
                # TODO(synk): if vld ever saturates for large K, load one
                # aligned slab + halo and synthesize taps with pltpu.roll.
                for kk in range(K):                     # static tap unroll
                    col = start * stride + kk - src_pad
                    xk = read_tap(c0, col, l_tile, stride).astype(f32)
                    acc = acc + xk * w_taps[kk]
                o_ref[0, pl.ds(c0, csub), pl.ds(start, l_tile)] = (
                    acc.astype(o_ref.dtype))
                return inner_carry

            if n_interior <= 4:          # short: keep it visible to the scheduler
                for t in range(t_lo, t_hi):
                    t_body(t, 0)
            else:                        # long: bound live ranges / code size
                lax.fori_loop(t_lo, t_hi, t_body, 0)

        # -- edge tiles: static starts, taps clipped against the source -------
        for t in edge_ts:
            start = t * l_tile
            tl = min(l_tile, l_out - start)
            acc = jnp.broadcast_to(b_cs, (csub, tl))
            for kk in range(K):
                off = start * stride + kk - src_pad
                if stride == 1:
                    lo, hi = max(0, off), min(src_len, off + tl)
                    if hi <= lo:
                        continue                     # tap fully inside zero pad
                    xk = read_tap(c0, lo, hi - lo).astype(f32)
                    contrib = xk * w_cols[kk]
                    if lo > off or hi < off + tl:    # place into full-width acc
                        pieces = []
                        if lo > off:
                            pieces.append(jnp.zeros((csub, lo - off), f32))
                        pieces.append(contrib)
                        if hi < off + tl:
                            pieces.append(
                                jnp.zeros((csub, off + tl - hi), f32))
                        contrib = jnp.concatenate(pieces, axis=1)
                    acc = acc + contrib
                else:
                    # stride > 1 only occurs on the staged (pre-padded) path,
                    # where every read is in range.
                    xk = read_tap(c0, off, tl, stride).astype(f32)
                    acc = acc + xk * w_cols[kk]
            o_ref[0, pl.ds(c0, csub), pl.ds(start, tl)] = acc.astype(o_ref.dtype)
        return carry

    if num_cs == 1:
        cs_body(0, 0)
    else:
        lax.fori_loop(0, num_cs, cs_body, 0)


_DEFAULT_VMEM_CAP = 64 * 1024 * 1024      # conservative fallback (v7x per-core)


def _vmem_capacity_bytes():
    try:
        cap = int(pltpu.get_tpu_info().vmem_capacity_bytes)
        if cap > 0:
            return cap
    except Exception:
        pass
    return _DEFAULT_VMEM_CAP


def _choose_channel_tile(n, c_in, mult, l_in, l_out, l_pad, in_itemsize,
                         out_itemsize, stage_itemsize, use_staging, budget):
    """Largest channel tile whose double-buffered blocks (+ staging scratch)
    fit the per-step VMEM budget, preferring >=2 total grid steps so megacore
    parts can split the grid across TensorCores."""
    def footprint(cti):
        ct_out = cti * mult
        f = 2 * cti * l_in * in_itemsize + 2 * ct_out * l_out * out_itemsize
        if use_staging:
            f += ct_out * l_pad * stage_itemsize
        return f

    cands = sorted({c_in} | {d for d in range(8, c_in, 8) if c_in % d == 0})
    fit = [d for d in cands if footprint(d) <= budget]
    if not fit:
        # TODO(synk): nothing fits (huge L); add an L-tiled variant with a K-1
        # halo instead of blowing past the budget with the smallest tile.
        fit = [cands[0]]
    best = max(fit)
    if n * (c_in // best) < 2:
        alts = [d for d in fit if n * (c_in // d) >= 2]
        if alts:
            best = max(alts)
    return best


def _choose_lane_tile(l_out):
    if l_out >= 512:
        return 512
    return max(128, ((l_out + 127) // 128) * 128)


def _choose_row_subtile(rows, l_tile):
    """Rows per in-kernel channel sub-tile so the f32 accumulator stays at
    roughly 8 vregs (<= 32 KiB), independent of the VMEM block size."""
    cmax = max(1, (8 * 8 * 128) // l_tile)
    divs = [d for d in range(1, rows + 1) if rows % d == 0 and d <= cmax]
    pref = [d for d in divs if d % 8 == 0]
    return max(pref) if pref else max(divs)


def depthwise_conv1d(x, weight, bias=None, *, stride=1, padding=0,
                     channel_tile=None, lane_tile=None, row_subtile=None):
    """Depthwise 1D conv matching torch.nn.Conv1d(groups=in_channels).

    x:      (N, C_in, L)   PyTorch NCL layout (kept as-is; no transposes)
    weight: (C_out, 1, K)  groups = C_in, depth multiplier = C_out / C_in
    bias:   (C_out,) or None
    returns (N, C_out, L_out) with L_out = (L + 2*padding - K)//stride + 1
    """
    n, c_in, l_in = x.shape
    c_out, w_in, k = weight.shape
    assert w_in == 1 and c_out % c_in == 0, \
        "out_channels must be an integer multiple of in_channels"
    mult = c_out // c_in
    l_pad = l_in + 2 * padding
    l_out = (l_pad - k) // stride + 1
    assert l_out >= 1, "empty output"

    w2 = weight.reshape(c_out, k)                 # channels on sublanes
    if bias is None:
        bias = jnp.zeros((c_out,), x.dtype)
    b2 = bias.reshape(c_out, 1)

    # Fast (no-staging) path for the common Squeezeformer configuration.
    use_staging = (mult > 1) or (stride > 1)
    stage_dtype = (x.dtype if jnp.dtype(x.dtype) in
                   (jnp.dtype(jnp.bfloat16), jnp.dtype(jnp.float32))
                   else jnp.float32)

    in_itemsize = jnp.dtype(x.dtype).itemsize
    stage_itemsize = jnp.dtype(stage_dtype).itemsize
    vmem_cap = _vmem_capacity_bytes()
    budget = vmem_cap // 4               # ~32 MiB on v5e/v6e, ~16 MiB on v7x

    if channel_tile is None:
        channel_tile = _choose_channel_tile(
            n, c_in, mult, l_in, l_out, l_pad, in_itemsize, in_itemsize,
            stage_itemsize, use_staging, budget)
    assert c_in % channel_tile == 0 and (
        channel_tile % 8 == 0 or channel_tile == c_in), channel_tile
    cti = channel_tile
    ct_out = cti * mult

    if lane_tile is None:
        lane_tile = _choose_lane_tile(l_out)
    assert lane_tile % 128 == 0 and lane_tile >= 128, lane_tile
    if row_subtile is None:
        row_subtile = _choose_row_subtile(ct_out, lane_tile)
    assert ct_out % row_subtile == 0, (ct_out, row_subtile)

    footprint = (2 * cti * l_in * in_itemsize
                 + 2 * ct_out * l_out * in_itemsize)
    if use_staging:
        footprint += ct_out * l_pad * stage_itemsize
    vmem_limit = int(min(vmem_cap * 3 // 4,
                         max(32 * 1024 * 1024, footprint + 16 * 1024 * 1024)))

    kernel = functools.partial(
        _dwconv1d_kernel, K=k, stride=stride, padding=padding, mult=mult,
        l_in=l_in, l_out=l_out, l_tile=lane_tile, csub=row_subtile,
        use_staging=use_staging, stage_dtype=stage_dtype)

    scratch_shapes = ([pltpu.VMEM((ct_out, l_pad), stage_dtype)]
                      if use_staging else [])
    # Channel tiles on the outer grid axis: the weight/bias block index is
    # constant across the (inner) batch axis so their DMAs are reused.
    grid = (c_in // cti, n)

    out = pl.pallas_call(
        kernel,
        out_shape=jax.ShapeDtypeStruct((n, c_out, l_out), x.dtype),
        grid_spec=pltpu.PrefetchScalarGridSpec(
            num_scalar_prefetch=0,
            grid=grid,
            in_specs=[
                pl.BlockSpec((1, cti, l_in), lambda j, i: (i, j, 0)),
                pl.BlockSpec((ct_out, k), lambda j, i: (j, 0)),
                pl.BlockSpec((ct_out, 1), lambda j, i: (j, 0)),
            ],
            out_specs=pl.BlockSpec((1, ct_out, l_out), lambda j, i: (i, j, 0)),
            scratch_shapes=scratch_shapes,
        ),
        compiler_params=pltpu.CompilerParams(
            dimension_semantics=("parallel", "parallel"),
            vmem_limit_bytes=vmem_limit),
    )(x, w2, b2)
    return out


def _reference_depthwise_conv1d(x, weight, bias, *, stride, padding):
    """Pure-JAX reference (lax conv) for correctness checking."""
    c_in = x.shape[1]
    out = jax.lax.conv_general_dilated(
        x.astype(jnp.float32),
        weight.astype(jnp.float32),
        window_strides=(stride,),
        padding=[(padding, padding)],
        feature_group_count=c_in,
        dimension_numbers=("NCH", "OIH", "NCH"),
    )
    if bias is not None:
        out = out + bias.astype(jnp.float32)[None, :, None]
    return out


def _run_case(name, key, *, n, c_in, mult, k, stride, padding, l, dtype, tol,
              **tile_kwargs):
    c_out = c_in * mult
    kx, kw, kb = jax.random.split(key, 3)
    x = jax.random.normal(kx, (n, c_in, l), jnp.float32).astype(dtype)
    weight = (jax.random.normal(kw, (c_out, 1, k), jnp.float32) * 0.1).astype(dtype)
    bias = (jax.random.normal(kb, (c_out,), jnp.float32) * 0.1).astype(dtype)

    out = depthwise_conv1d(x, weight, bias, stride=stride, padding=padding,
                           **tile_kwargs)
    out = jax.block_until_ready(out)
    ref = _reference_depthwise_conv1d(x, weight, bias, stride=stride,
                                      padding=padding)
    assert out.shape == ref.shape, (name, out.shape, ref.shape)
    err = float(jnp.max(jnp.abs(out.astype(jnp.float32) - ref)))
    assert err <= tol, (name, err)
    return out


if __name__ == "__main__":
    key = jax.random.PRNGKey(0)
    keys = jax.random.split(key, 4)

    # (a) Depth multiplier 2 (staged path), the module's generic config.
    _run_case("mult2", keys[0], n=2, c_in=8, mult=2, k=3, stride=1, padding=1,
              l=16, dtype=jnp.float32, tol=1e-5)

    # (b) Squeezeformer hot case: mult=1, 'same' padding, K=31.  Small forced
    # tiles exercise multiple grid steps, the in-kernel channel-sub-tile loop
    # and the interior lane fori_loop.
    _run_case("mult1_k31", keys[1], n=2, c_in=32, mult=1, k=31, stride=1,
              padding=15, l=1024, dtype=jnp.float32, tol=1e-4,
              channel_tile=16, lane_tile=128, row_subtile=8)

    # (c) Strided conv (staged path with strided tap reads).
    _run_case("stride2", keys[2], n=1, c_in=8, mult=1, k=3, stride=2,
              padding=1, l=16, dtype=jnp.float32, tol=1e-5)

    # (d) bf16 activations on the fast path (taps read in bf16, f32 accumulate).
    _run_case("bf16", keys[3], n=1, c_in=16, mult=1, k=31, stride=1,
              padding=15, l=256, dtype=jnp.bfloat16, tol=3e-2)

    print("KERNEL_OK")
</pallas_src>

<mosaic_0001>
module attributes {stable_mosaic.version = 11 : i64} {
  func.func @_dwconv1d_kernel(%arg0: i32, %arg1: i32, %arg2: memref<1x8x16xf32, #tpu.memory_space<vmem>>, %arg3: memref<16x3xf32, #tpu.memory_space<vmem>>, %arg4: memref<16x1xf32, #tpu.memory_space<vmem>>, %arg5: memref<1x16x16xf32, #tpu.memory_space<vmem>>, %arg6: memref<16x18xf32, #tpu.memory_space<vmem>>) attributes {dimension_semantics = [#tpu.dimension_semantics<parallel>, #tpu.dimension_semantics<parallel>], iteration_bounds = array<i64: 1, 2>, scalar_prefetch = 0 : i64, scratch_operands = 1 : i64, tpu.core_type = #tpu.core_type<tc>, window_params = [{transform_indices = @transform_0, window_bounds = array<i64: 1, 8, 16>}, {transform_indices = @transform_1, window_bounds = array<i64: 16, 3>}, {transform_indices = @transform_2, window_bounds = array<i64: 16, 1>}, {transform_indices = @transform_3, window_bounds = array<i64: 1, 16, 16>}]} {
    %cst = arith.constant 0.000000e+00 : f32
    %0 = vector.broadcast %cst : f32 to vector<16x1xf32>
    %c0 = arith.constant 0 : index
    %c0_0 = arith.constant 0 : index
    %1 = vector.load %arg6[%c0, %c0_0] : memref<16x18xf32, #tpu.memory_space<vmem>>, vector<16x1xf32>
    tpu.vector_store %arg6[%c0, %c0_0], %0 {strides = array<i32>} : memref<16x18xf32, #tpu.memory_space<vmem>>, vector<16x1xf32>,
    %c0_1 = arith.constant 0 : index
    %c17 = arith.constant 17 : index
    %2 = vector.load %arg6[%c0_1, %c17] : memref<16x18xf32, #tpu.memory_space<vmem>>, vector<16x1xf32>
    tpu.vector_store %arg6[%c0_1, %c17], %0 {strides = array<i32>} : memref<16x18xf32, #tpu.memory_space<vmem>>, vector<16x1xf32>,
    %c0_i32 = arith.constant 0 : i32
    %c8_i32 = arith.constant 8 : i32
    %3 = arith.addi %c0_i32, %c8_i32 : i32
    %c1_i32 = arith.constant 1 : i32
    scf.for %arg7 = %c0_i32 to %3 step %c1_i32  : i32 {
      %c0_14 = arith.constant 0 : index
      %26 = arith.index_cast %arg7 : i32 to index
      %c0_15 = arith.constant 0 : index
      %27 = vector.load %arg2[%c0_14, %26, %c0_15] : memref<1x8x16xf32, #tpu.memory_space<vmem>>, vector<1x1x16xf32>
      %28 = vector.shape_cast %27 : vector<1x1x16xf32> to vector<1x16xf32>
      %29 = vector.shape_cast %28 : vector<1x16xf32> to vector<1x16xf32>
      %30 = vector.broadcast %29 : vector<1x16xf32> to vector<2x16xf32>
      %c2_i32 = arith.constant 2 : i32
      %31 = arith.muli %arg7, %c2_i32 : i32
      %32 = arith.index_cast %31 : i32 to index
      %c1_16 = arith.constant 1 : index
      %33 = vector.load %arg6[%32, %c1_16] : memref<16x18xf32, #tpu.memory_space<vmem>>, vector<2x16xf32>
      tpu.vector_store %arg6[%32, %c1_16], %30 {strides = array<i32>} : memref<16x18xf32, #tpu.memory_space<vmem>>, vector<2x16xf32>,
    }
    %c8_i32_2 = arith.constant 8 : i32
    %c0_3 = arith.constant 0 : index
    %c0_4 = arith.constant 0 : index
    %4 = vector.load %arg3[%c0_3, %c0_4] : memref<16x3xf32, #tpu.memory_space<vmem>>, vector<16x3xf32>
    %c0_5 = arith.constant 0 : index
    %c0_6 = arith.constant 0 : index
    %5 = vector.load %arg4[%c0_5, %c0_6] : memref<16x1xf32, #tpu.memory_space<vmem>>, vector<16x1xf32>
    %6 = vector.extract_strided_slice %4 {offsets = [0, 0], sizes = [16, 1], strides = [1, 1]} : vector<16x3xf32> to vector<16x1xf32>
    %7 = vector.extract_strided_slice %4 {offsets = [0, 1], sizes = [16, 1], strides = [1, 1]} : vector<16x3xf32> to vector<16x1xf32>
    %8 = vector.extract_strided_slice %4 {offsets = [0, 2], sizes = [16, 1], strides = [1, 1]} : vector<16x3xf32> to vector<16x1xf32>
    %9 = vector.shape_cast %5 : vector<16x1xf32> to vector<16x1xf32>
    %10 = vector.broadcast %9 : vector<16x1xf32> to vector<16x16xf32>
    %c0_7 = arith.constant 0 : index
    %c0_8 = arith.constant 0 : index
    %11 = vector.load %arg6[%c0_7, %c0_8] : memref<16x18xf32, #tpu.memory_space<vmem>>, vector<16x16xf32>
    %12 = vector.broadcast %6 : vector<16x1xf32> to vector<16x16xf32>
    %13 = arith.mulf %11, %12 : vector<16x16xf32>
    %14 = arith.addf %10, %13 : vector<16x16xf32>
    %c0_9 = arith.constant 0 : index
    %c1 = arith.constant 1 : index
    %15 = vector.load %arg6[%c0_9, %c1] : memref<16x18xf32, #tpu.memory_space<vmem>>, vector<16x16xf32>
    %16 = vector.broadcast %7 : vector<16x1xf32> to vector<16x16xf32>
    %17 = arith.mulf %15, %16 : vector<16x16xf32>
    %18 = arith.addf %14, %17 : vector<16x16xf32>
    %c0_10 = arith.constant 0 : index
    %c2 = arith.constant 2 : index
    %19 = vector.load %arg6[%c0_10, %c2] : memref<16x18xf32, #tpu.memory_space<vmem>>, vector<16x16xf32>
    %20 = vector.broadcast %8 : vector<16x1xf32> to vector<16x16xf32>
    %21 = arith.mulf %19, %20 : vector<16x16xf32>
    %22 = arith.addf %18, %21 : vector<16x16xf32>
    %c0_11 = arith.constant 0 : index
    %c0_12 = arith.constant 0 : index
    %c0_13 = arith.constant 0 : index
    %23 = vector.load %arg5[%c0_11, %c0_12, %c0_13] : memref<1x16x16xf32, #tpu.memory_space<vmem>>, vector<1x16x16xf32>
    %24 = vector.shape_cast %23 : vector<1x16x16xf32> to vector<16x16xf32>
    %25 = vector.shape_cast %22 : vector<16x16xf32> to vector<1x16x16xf32>
    tpu.vector_store %arg5[%c0_11, %c0_12, %c0_13], %25 {strides = array<i32>} : memref<1x16x16xf32, #tpu.memory_space<vmem>>, vector<1x16x16xf32>,
    return
  }
  func.func @transform_0(%arg0: i32, %arg1: i32) -> (i32, i32, i32) {
    %c0_i32 = arith.constant 0 : i32
    %c0_i32_0 = arith.constant 0 : i32
    return %arg1, %arg0, %c0_i32 : i32, i32, i32
  }
  func.func @transform_1(%arg0: i32, %arg1: i32) -> (i32, i32) {
    %c0_i32 = arith.constant 0 : i32
    %c0_i32_0 = arith.constant 0 : i32
    return %arg0, %c0_i32 : i32, i32
  }
  func.func @transform_2(%arg0: i32, %arg1: i32) -> (i32, i32) {
    %c0_i32 = arith.constant 0 : i32
    %c0_i32_0 = arith.constant 0 : i32
    return %arg0, %c0_i32 : i32, i32
  }
  func.func @transform_3(%arg0: i32, %arg1: i32) -> (i32, i32, i32) {
    %c0_i32 = arith.constant 0 : i32
    %c0_i32_0 = arith.constant 0 : i32
    return %arg1, %arg0, %c0_i32 : i32, i32, i32
  }
}

</mosaic_0001>

<llo_original>
// kernel: tpu_custom_call.1
$region0: #{tpu_custom_call.1}
  #allocation0 [shape = 'u32[]', space=smem, size = 0x4, offset = 0x4, fixed_abs, tag = 'smem constant byte address 0x4 - core index']
  #allocation1 [shape = 'u32[72,128]{1,0:T(1,128)}', space=vmem, size = 0x9000, scoped, tag = 'internal scratch']
  #allocation2 [shape = 'f32[16,18]{1,0:T(8,128)}', space=vmem, size = 0x2000, scoped, tag = 'scratch operand']
  %s0 = inlined_call_operand.vmem [shape: f32[2,8,16], index: 0, kind: input, shape index: {}]
  %s1 = inlined_call_operand.vmem [shape: f32[16,3], index: 1, kind: input, shape index: {}]
  %s2 = inlined_call_operand.vmem [shape: f32[16,1], index: 2, kind: input, shape index: {}]
  %s3 = inlined_call_operand.hbm [shape: f32[2,16,16], index: 3, kind: output, shape index: {}]
  %s4 = sld [smem:[#allocation0]]
  $region52: #{tpu_custom_call.1} parent=0
    _
  %s6 = ssub.s32 1, %s4
  %s7 = scalar_select 0, %s6, %s4
  $region1: #{tpu_custom_call.1} parent=0
    #allocation3 [shape = 'u8[16384]{0}', space=vmem, size = 0x4000, scoped, tag = 'output window, operand 0']
    #allocation4 [shape = 's32[2]{0}', space=sflag, size = 0x8, scoped, tag = 'scoped memory for tpu_custom_call.1']
    %8 = vsyncpa [#allocation4], 0
    %s9 = scalar_lea.sflag [#allocation4], 1
    %10 = vsyncpa %s9, 0
    loop: start=0, step=1, limit=4
    $region2: #{tpu_custom_call.1} parent=1 // loop_pre_header
      _
    $region3: #{tpu_custom_call.1} parent=1 // loop_header
      %s12 = sphi 0, %s16
      %p13 = scmp.ge.s32.totalorder %s12, 4
      %s19 = sphi 0, %s31
      %s20 = sphi 0, %s27
      %s21 = sphi 0, %s19
      %s22 = sphi 0, %s20
      %s23 = sphi 0, %s21
      %s24 = sphi 0, %s22
      %s36 = sphi 0, %s38
      %s39 = sphi 0, %s36
      %s40 = sphi 0, %s39
      %s56 = sphi 0, %s40
      %s62 = sphi 0, %s64
      %s65 = sphi 0, %s62
      %s66 = sphi 0, %s65
      %s82 = sphi 0, %s66
      %s88 = sphi 0, %s90
      %s91 = sphi 0, %s88
      %s92 = sphi 0, %s91
      %s108 = sphi 0, %s92
      %s116 = sphi 0, %s118
      %s119 = sphi 0, %s116
      %s120 = sphi 0, %s119
      %s136 = sphi 0, %s120
    $region4: #{tpu_custom_call.1} parent=1 // loop_header_branch
      %15 = sbr.rel (%p13) target = $region8
    $region5: #{tpu_custom_call.1} parent=1 // loop_body
      %s17 = ssub.s32 %s12, 1
      %s18 = ssub.s32 %s12, 2
      %s25 = sadd.s32 1, %s20
      %p26 = scmp.ge.s32.totalorder %s25, 2
      %s27 = scalar_select %p26, 0, %s25
      %s28 = sadd.s32 1, %s19
      %s29 = scalar_select %p26, %s28, %s19
      %p30 = scmp.ge.s32.totalorder %s29, 1
      %s31 = scalar_select %p30, 0, %s29
      %s32 = ssub.s32 %s20, %s27
      %s33 = ssub.s32 %s19, %s31
      %s34 = sor.u32 %s32, %s33
      %p35 = scmp.eq.s32.totalorder %s34, 0
      %s37 = sadd.s32 %s36, 1
      %s38 = scalar_select %p35, %s36, %s37
      %p41 = pneg %p35
      %p42 = scmp.eq.s32.totalorder %s12, 1
      %p43 = por %p41, %p42
      %p44 = scmp.ne.s32.totalorder %s36, %s39
      %p45 = scmp.eq.s32.totalorder %s12, 0
      %p46 = por %p44, %p45
      %p47 = scmp.ne.s32.totalorder %s36, %s39
      %p48 = scmp.eq.s32.totalorder %s17, 1
      %p49 = por %p47, %p48
      %p50 = scmp.ne.s32.totalorder %s39, %s40
      %p51 = scmp.eq.s32.totalorder %s17, 0
      %p52 = por %p50, %p51
      %p53 = scmp.ne.s32.totalorder %s39, %s40
      %p54 = scmp.eq.s32.totalorder %s18, 1
      %p55 = por %p53, %p54
      %p57 = scmp.ne.s32.totalorder %s40, %s56
      %p58 = scmp.eq.s32.totalorder %s18, 0
      %p59 = por %p57, %p58
      %s60 = ssub.s32 %s19, %s31
      %p61 = scmp.eq.s32.totalorder %s60, 0
      %s63 = sadd.s32 %s62, 1
      %s64 = scalar_select %p61, %s62, %s63
      %p67 = pneg %p61
      %p68 = scmp.eq.s32.totalorder %s12, 1
      %p69 = por %p67, %p68
      %p70 = scmp.ne.s32.totalorder %s62, %s65
      %p71 = scmp.eq.s32.totalorder %s12, 0
      %p72 = por %p70, %p71
      %p73 = scmp.ne.s32.totalorder %s62, %s65
      %p74 = scmp.eq.s32.totalorder %s17, 1
      %p75 = por %p73, %p74
      %p76 = scmp.ne.s32.totalorder %s65, %s66
      %p77 = scmp.eq.s32.totalorder %s17, 0
      %p78 = por %p76, %p77
      %p79 = scmp.ne.s32.totalorder %s65, %s66
      %p80 = scmp.eq.s32.totalorder %s18, 1
      %p81 = por %p79, %p80
      %p83 = scmp.ne.s32.totalorder %s66, %s82
      %p84 = scmp.eq.s32.totalorder %s18, 0
      %p85 = por %p83, %p84
      %s86 = ssub.s32 %s19, %s31
      %p87 = scmp.eq.s32.totalorder %s86, 0
      %s89 = sadd.s32 %s88, 1
      %s90 = scalar_select %p87, %s88, %s89
      %p93 = pneg %p87
      %p94 = scmp.eq.s32.totalorder %s12, 1
      %p95 = por %p93, %p94
      %p96 = scmp.ne.s32.totalorder %s88, %s91
      %p97 = scmp.eq.s32.totalorder %s12, 0
      %p98 = por %p96, %p97
      %p99 = scmp.ne.s32.totalorder %s88, %s91
      %p100 = scmp.eq.s32.totalorder %s17, 1
      %p101 = por %p99, %p100
      %p102 = scmp.ne.s32.totalorder %s91, %s92
      %p103 = scmp.eq.s32.totalorder %s17, 0
      %p104 = por %p102, %p103
      %p105 = scmp.ne.s32.totalorder %s91, %s92
      %p106 = scmp.eq.s32.totalorder %s18, 1
      %p107 = por %p105, %p106
      %p109 = scmp.ne.s32.totalorder %s92, %s108
      %p110 = scmp.eq.s32.totalorder %s18, 0
      %p111 = por %p109, %p110
      %s112 = ssub.s32 %s20, %s27
      %s113 = ssub.s32 %s19, %s31
      %s114 = sor.u32 %s112, %s113
      %p115 = scmp.eq.s32.totalorder %s114, 0
      %s117 = sadd.s32 %s116, 1
      %s118 = scalar_select %p115, %s116, %s117
      %p121 = pneg %p115
      %p122 = scmp.eq.s32.totalorder %s12, 1
      %p123 = por %p121, %p122
      %p124 = scmp.ne.s32.totalorder %s116, %s119
      %p125 = scmp.eq.s32.totalorder %s12, 0
      %p126 = por %p124, %p125
      %p127 = scmp.ne.s32.totalorder %s116, %s119
      %p128 = scmp.eq.s32.totalorder %s17, 1
      %p129 = por %p127, %p128
      %p130 = scmp.ne.s32.totalorder %s119, %s120
      %p131 = scmp.eq.s32.totalorder %s17, 0
      %p132 = por %p130, %p131
      %p133 = scmp.ne.s32.totalorder %s119, %s120
      %p134 = scmp.eq.s32.totalorder %s18, 1
      %p135 = por %p133, %p134
      %p137 = scmp.ne.s32.totalorder %s120, %s136
      %p138 = scmp.eq.s32.totalorder %s18, 0
      %p139 = por %p137, %p138
      %p140 = scmp.le.s32.totalorder 1, %s12
      %p141 = scmp.lt.s32.totalorder %s12, 3
      %p142 = pnand %p140, %p141
      %p143 = pneg %p142
      // Predicated region
      $region9: #{tpu_custom_call.1} parent=5 // pred_check
        _
      $region10: #{tpu_custom_call.1} parent=5 // pred_check_branch
        %145 = sbr.rel (%p142) target = $region12
      $region11: #{tpu_custom_call.1} parent=5 // pred_region
        %s146 = ssub.s32 %s12, 1
        // Predicated region
        $region13: #{tpu_custom_call.1} parent=11 // pred_check
          %p147 = pneg %p78
        $region14: #{tpu_custom_call.1} parent=11 // pred_check_branch
          %149 = sbr.rel (%p147) target = $region16
        $region15: #{tpu_custom_call.1} parent=11 // pred_region
          %s150 = smul.u32 2, %s21
          %p151 = scmp.lt.s32.totalorder %s150, 1
          %s152 = scalar_select %p151, %s150, 1
          %s153 = smul.addr %s152, 8
          %s154 = scalar_lea.vmem %s1, %s153
          %s155 = smul.u32 2, %s21
        $region16: #{tpu_custom_call.1} parent=11 // pred_fallthru
          _
        // Predicated region
        $region17: #{tpu_custom_call.1} parent=11 // pred_check
          %p156 = pneg %p104
        $region18: #{tpu_custom_call.1} parent=11 // pred_check_branch
          %158 = sbr.rel (%p156) target = $region20
        $region19: #{tpu_custom_call.1} parent=11 // pred_region
          %s159 = smul.u32 2, %s21
          %p160 = scmp.lt.s32.totalorder %s159, 1
          %s161 = scalar_select %p160, %s159, 1
          %s162 = smul.addr %s161, 8
          %s163 = scalar_lea.vmem %s2, %s162
          %s164 = smul.u32 2, %s21
        $region20: #{tpu_custom_call.1} parent=11 // pred_fallthru
          _
      $region12: #{tpu_custom_call.1} parent=5 // pred_fallthru
        _
      %p165 = scmp.lt.s32.totalorder %s12, 2
      // Predicated region
      $region21: #{tpu_custom_call.1} parent=5 // pred_check
        %p166 = pneg %p165
      $region22: #{tpu_custom_call.1} parent=5 // pred_check_branch
        %168 = sbr.rel (%p166) target = $region24
      $region23: #{tpu_custom_call.1} parent=5 // pred_region
        // Predicated region
        $region25: #{tpu_custom_call.1} parent=23 // pred_check
          %p169 = pneg %p46
        $region26: #{tpu_custom_call.1} parent=23 // pred_check_branch
          %171 = sbr.rel (%p169) target = $region28
        $region27: #{tpu_custom_call.1} parent=23 // pred_region
          %p172 = scmp.lt.s32.totalorder %s20, 1
          %s173 = scalar_select %p172, %s20, 1
          %p174 = scmp.lt.s32.totalorder %s19, 0
          %s175 = scalar_select %p174, %s19, 0
          %s176 = sadd.s32 %s175, %s173
          %s177 = smul.addr %s176, 8
          %s178 = scalar_lea.vmem %s0, %s177
        $region28: #{tpu_custom_call.1} parent=23 // pred_fallthru
          _
      $region24: #{tpu_custom_call.1} parent=5 // pred_fallthru
        _
      %p179 = scmp.le.s32.totalorder 1, %s12
      %p180 = scmp.lt.s32.totalorder %s12, 3
      %p181 = pnand %p179, %p180
      %p182 = pneg %p181
      // Predicated region
      $region29: #{tpu_custom_call.1} parent=5 // pred_check
        _
      $region30: #{tpu_custom_call.1} parent=5 // pred_check_branch
        %184 = sbr.rel (%p181) target = $region32
      $region31: #{tpu_custom_call.1} parent=5 // pred_region
        %s185 = ssub.s32 %s12, 1
        %p186 = scmp.lt.s32.totalorder %s22, 1
        %s187 = scalar_select %p186, %s22, 1
        %p188 = scmp.lt.s32.totalorder %s21, 0
        %s189 = scalar_select %p188, %s21, 0
        %s190 = sadd.s32 %s189, %s187
        %s191 = smul.addr %s190, 8
        %s192 = scalar_lea.vmem %s0, %s191
        %p193 = pneg %p52
        %p194 = pneg %p49
        %s195 = smul.u32 2, %s21
        %p196 = scmp.lt.s32.totalorder %s195, 1
        %s197 = scalar_select %p196, %s195, 1
        %s198 = smul.addr %s197, 8
        %s199 = scalar_lea.vmem %s1, %s198
        %p200 = pneg %p78
        %p201 = pneg %p75
        %s202 = smul.u32 2, %s21
        %p203 = scmp.lt.s32.totalorder %s202, 1
        %s204 = scalar_select %p203, %s202, 1
        %s205 = smul.addr %s204, 8
        %s206 = scalar_lea.vmem %s2, %s205
        %p207 = pneg %p104
        %p208 = pneg %p101
        %p209 = pneg %p132
        %p210 = pneg %p129
        %s211 = sand.u32 %s119, 1
        %s212 = scalar_lea.sflag [#allocation4], %s211
        %s213 = sand.u32 %s119, 1
        %s214 = smul.addr %s213, 16
        %s215 = scalar_lea.vmem [#allocation3], %s214
        %p216 = scmp.lt.s32.totalorder %s22, 1
        %s217 = scalar_select %p216, %s22, 1
        %p218 = scmp.lt.s32.totalorder %s21, 0
        %s219 = scalar_select %p218, %s21, 0
        %s220 = sadd.s32 %s219, %s217
        %s221 = smul.addr %s220, 8
        %s222 = scalar_lea.vmem %s0, %s221
        %s223 = smul.u32 2, %s21
        %p224 = scmp.lt.s32.totalorder %s223, 1
        %s225 = scalar_select %p224, %s223, 1
        %s226 = smul.addr %s225, 8
        %s227 = scalar_lea.vmem %s1, %s226
        %s228 = smul.u32 2, %s21
        %s229 = smul.u32 2, %s21
        %p230 = scmp.lt.s32.totalorder %s229, 1
        %s231 = scalar_select %p230, %s229, 1
        %s232 = smul.addr %s231, 8
        %s233 = scalar_lea.vmem %s2, %s232
        %s234 = smul.u32 2, %s21
        %s235 = smul.u32 2, %s21
        %vm236 = vcmask 7168
        %237 = vst.msk [vmem:[#allocation2] sm:$0xff] %vm236, 0.0
        %238 = vst.msk [vmem:[#allocation2 + $0x8] sm:$0xff] %vm236, 0.0
        %vm239 = vcmask 146568
        %240 = vst.msk [vmem:[#allocation2] sm:$0xff] %vm239, 0.0
        %241 = vst.msk [vmem:[#allocation2 + $0x8] sm:$0xff] %vm239, 0.0
        loop: start=0, step=1, limit=8
        $region33: #{tpu_custom_call.1} parent=31 // loop_pre_header
          _
        $region34: #{tpu_custom_call.1} parent=31 // loop_header
          %s243 = sphi 0, %s247
          %p244 = scmp.ge.s32.totalorder %s243, 8
        $region35: #{tpu_custom_call.1} parent=31 // loop_header_branch
          %246 = sbr.rel (%p244) target = $region39
        $region36: #{tpu_custom_call.1} parent=31 // loop_body
          %s248 = scalar_lea.vmem %s222, %s243
          %v249 = vld [vmem:[%s248] sm:$0x1]
          %v250 = vperm.slane %v249, 0
          %s251 = smul.u32 %s243, 2
          %253 = vrot.lane.b32.xlu0 %v250, 1
          %v254 = vpop.permute.xlu0 %253
          %s256 = scalar_lea.vmem [#allocation2], %s251
          %vm257 = vcmask 132104
          %258 = vst.msk [vmem:[%s256] sm:$0x3] %vm257, %v254
        $region37: #{tpu_custom_call.1} parent=31 // loop_footer
          %s247 = sadd.s32 1, %s243
        $region38: #{tpu_custom_call.1} parent=31 // loop_footer_branch
          %242 = sbr.rel target = $region34
        $region39: #{tpu_custom_call.1} parent=31 // loop_exit
          _
        %v259 = vld [vmem:[%s227] sm:$0xff]
        %v260 = vld [vmem:[%s227 + $0x8] sm:$0xff]
        %v261 = vld [vmem:[%s233] sm:$0xff]
        %v262 = vld [vmem:[%s233 + $0x8] sm:$0xff]
        %264 = vset.pattern.permute.xlu0 0
        %265 = vperm.xlu0 %264, %v261
        %v266 = vpop.permute.xlu0 %265
        %269 = vset.pattern.permute.xlu0 0
        %270 = vperm.xlu0 %269, %v262
        %v271 = vpop.permute.xlu0 %270
        %v273 = vld [vmem:[#allocation2] sm:$0xff]
        %v274 = vld [vmem:[#allocation2 + $0x8] sm:$0xff]
        %276 = vset.pattern.permute.xlu0 0
        %277 = vperm.xlu0 %276, %v259
        %v278 = vpop.permute.xlu0 %277
        %281 = vset.pattern.permute.xlu0 0
        %282 = vperm.xlu0 %281, %v260
        %v283 = vpop.permute.xlu0 %282
        %v285 = vmul.f32 %v273, %v278
        %v286 = vmul.f32 %v274, %v283
        %v287 = vadd.f32 %v266, %v285
        %v288 = vadd.f32 %v271, %v286
        %289 = vset.pattern.permute.xlu0 1
        %290 = vperm.xlu0 %289, %v259
        %v291 = vpop.permute.xlu0 %290
        %293 = vset.pattern.permute.xlu0 1
        %294 = vperm.xlu0 %293, %v260
        %v295 = vpop.permute.xlu0 %294
        %v297 = vmul.f32 %v273, %v291
        %v298 = vmul.f32 %v274, %v295
        %301 = vrot.lane.b32.xlu0 %v297, 127
        %v302 = vpop.permute.xlu0 %301
        %303 = vrot.lane.b32.xlu0 %v298, 127
        %v304 = vpop.permute.xlu0 %303
        %v307 = vadd.f32 %v287, %v302
        %v308 = vadd.f32 %v288, %v304
        %309 = vset.pattern.permute.xlu0 2
        %310 = vperm.xlu0 %309, %v259
        %v311 = vpop.permute.xlu0 %310
        %313 = vset.pattern.permute.xlu0 2
        %314 = vperm.xlu0 %313, %v260
        %v315 = vpop.permute.xlu0 %314
        %v317 = vmul.f32 %v273, %v311
        %v318 = vmul.f32 %v274, %v315
        %321 = vrot.lane.b32.xlu0 %v317, 126
        %v322 = vpop.permute.xlu0 %321
        %323 = vrot.lane.b32.xlu0 %v318, 126
        %v324 = vpop.permute.xlu0 %323
        %v327 = vadd.f32 %v307, %v322
        %v328 = vadd.f32 %v308, %v324
        %vm329 = vcmask 130048
        %330 = vst.msk [vmem:[%s215] sm:$0xff] %vm329, %v327
        %331 = vst.msk [vmem:[%s215 + $0x8] sm:$0xff] %vm329, %v328
        %s332 = sand.u32 %s119, 1
        %s333 = scalar_lea.sflag [#allocation4], %s332
        %s334 = sand.u32 %s119, 1
        %s335 = smul.addr %s334, 16
        %s336 = scalar_lea.vmem [#allocation3], %s335
        // Predicated region
        $region40: #{tpu_custom_call.1} parent=31 // pred_check
          %p337 = pneg %p129
        $region41: #{tpu_custom_call.1} parent=31 // pred_check_branch
          %339 = sbr.rel (%p337) target = $region43
        $region42: #{tpu_custom_call.1} parent=31 // pred_region
          %s340 = smul.u32 2, %s21
          %342 = vsyncadd %s333, 0
          %s343 = smul.addr %s22, 2
          %s344 = sadd.s32 %s340, %s343
          %s345 = smul.addr %s344, 8
          %s346 = scalar_lea.hbm %s3, %s345
          %s347 = sshll.u32 %s336, 4
          %s348 = int_to_ptr.vmem [resolvable:$true] %s347
          %s349 = sshll.u32 %s346, 4
          %s350 = int_to_ptr.hbm [resolvable:$true] %s349
          %355 = dma.vmem_to_hbm [thread:$0]  %s348, 256, %s350, %s333, 128, 128, 8
        $region43: #{tpu_custom_call.1} parent=31 // pred_fallthru
          _
      $region32: #{tpu_custom_call.1} parent=5 // pred_fallthru
        _
      %p356 = scmp.le.s32.totalorder 2, %s12
      // Predicated region
      $region44: #{tpu_custom_call.1} parent=5 // pred_check
        %p357 = pneg %p356
      $region45: #{tpu_custom_call.1} parent=5 // pred_check_branch
        %359 = sbr.rel (%p357) target = $region47
      $region46: #{tpu_custom_call.1} parent=5 // pred_region
        %s360 = ssub.s32 %s12, 2
        // Predicated region
        $region48: #{tpu_custom_call.1} parent=46 // pred_check
          %p361 = pneg %p135
        $region49: #{tpu_custom_call.1} parent=46 // pred_check_branch
          %363 = sbr.rel (%p361) target = $region51
        $region50: #{tpu_custom_call.1} parent=46 // pred_region
          %s364 = sand.u32 %s120, 1
          %s365 = scalar_lea.sflag [#allocation4], %s364
          %s366 = sand.u32 %s120, 1
          %s367 = smul.addr %s366, 16
          %s368 = scalar_lea.vmem [#allocation3], %s367
          %370 = dma.done %s365, 256
        $region51: #{tpu_custom_call.1} parent=46 // pred_fallthru
          _
      $region47: #{tpu_custom_call.1} parent=5 // pred_fallthru
        _
    $region6: #{tpu_custom_call.1} parent=1 // loop_footer
      %s16 = sadd.s32 1, %s12
    $region7: #{tpu_custom_call.1} parent=1 // loop_footer_branch
      %11 = sbr.rel target = $region3
    $region8: #{tpu_custom_call.1} parent=1 // loop_exit
      _
    %371 = vsyncpa [#allocation4], 1
    %s372 = scalar_lea.sflag [#allocation4], 1
    %373 = vsyncpa %s372, 1

</llo_original>
